<compile_context>
chip_gen: v5e
topology: v5e:2x2
jax: 0.10.0
libtpu: 0.0.40
codegen_flags: <defaults>
</compile_context>

<pallas_src>
import numpy as np
import jax
import jax.numpy as jnp
from jax.experimental import pallas as pl
from jax.experimental.pallas import tpu as pltpu

_LANE = 128              # lane width
_MIN_PALLAS_ELEMS = 32 * 1024   # below this, fused XLA beats a pallas_call
                                # launch; raise toward block_rows*128 (~0.5-1M)
                                # in production pipelines with deep pyramids


def _sublane_packing(dtype):
    """Native sublane packing of a (rows, 128) slab: 8 for 4-byte, 16 for
    2-byte (bf16), 32 for 1-byte dtypes."""
    itemsize = np.dtype(dtype).itemsize
    return 8 * max(1, 4 // itemsize)


def _chip_params():
    """(n_split, max_block_rows) tuned per TPU generation.

    v7x : 2 TensorCores/chip and ~3.2 TB/s HBM -> split row-blocks over both
          cores, 4 MiB f32 per input block (16 MiB double-buffered, inside the
          32 MiB scoped-VMEM default).
    v5/v6: single TensorCore -> no megacore split; 2 MiB per input block
          (8 MiB double-buffered, inside v5e's 16 MiB scoped-VMEM default).
    """
    kind = ""
    try:
        dev = jax.devices()[0]
        if dev.platform == "tpu":
            kind = dev.device_kind.lower()
    except Exception:
        pass
    if "v7" in kind:
        return 2, 8192
    if "v6" in kind or "v5" in kind:
        return 1, 4096
    return 1, 2048   # unknown / older chips: conservative


def _abs_diff_sum_pallas(a2, b2, n_split, block_rows_max):
    """sum(|a2 - b2|) over a (rows, 128) slab via a streaming Pallas kernel.

    rows must be a multiple of both inputs' sublane packing (caller ensures).
    """
    assert a2.shape == b2.shape and a2.shape[1] == _LANE
    rows = a2.shape[0]

    block_rows = min(block_rows_max, rows)       # multiple of packing <= rows
    num_blocks = pl.cdiv(rows, block_rows)
    if num_blocks < 2:
        n_split = 1                              # nothing to split
    blocks_per_core = pl.cdiv(num_blocks, n_split)

    def in_map(c, i):
        g = c * blocks_per_core + i
        # The logical block index can run past the array on the second core
        # when num_blocks is odd; clamp the DMA source (the kernel masks it).
        return (jnp.minimum(g, num_blocks - 1), 0)

    def kernel(a_ref, b_ref, o_ref):
        c = pl.program_id(0)
        i = pl.program_id(1)

        @pl.when(i == 0)
        def _():
            o_ref[...] = jnp.zeros_like(o_ref)

        # Upcast in-kernel; inputs were DMA'd at their native width.
        d = jnp.abs(a_ref[...].astype(jnp.float32)
                    - b_ref[...].astype(jnp.float32))

        def fold(x):
            # (block_rows, 128) -> (8, 128): pure vreg-wise VPU adds.
            return jnp.sum(x.reshape(block_rows // 8, 8, _LANE), axis=0)

        # int32 index math: fine for < ~2e9 rows (~2.7e11 elements).
        g = c * blocks_per_core + i
        full = (g + 1) * block_rows <= rows

        # Steady-state fast path: no iota / compare / select on full blocks.
        @pl.when(full)
        def _():
            o_ref[...] += fold(d)[None, :, :]

        # Only the last block per core (and core 1's clamped duplicate when
        # num_blocks is odd) can be partial / fully out of range.
        @pl.when(jnp.logical_not(full))
        def _():
            row = jax.lax.broadcasted_iota(jnp.int32, (block_rows, _LANE), 0)
            dm = jnp.where(g * block_rows + row < rows, d, 0.0)
            o_ref[...] += fold(dm)[None, :, :]

    partial = pl.pallas_call(
        kernel,
        out_shape=jax.ShapeDtypeStruct((n_split, 8, _LANE), jnp.float32),
        grid_spec=pltpu.PrefetchScalarGridSpec(
            num_scalar_prefetch=0,
            grid=(n_split, blocks_per_core),
            in_specs=[
                # NOTE: if a bundle dump shows exposed DMA waits, sweep
                # pipeline_mode=pl.Buffered(3) here (extra block of VMEM).
                pl.BlockSpec((block_rows, _LANE), in_map),
                pl.BlockSpec((block_rows, _LANE), in_map),
            ],
            out_specs=pl.BlockSpec((1, 8, _LANE), lambda c, i: (c, 0, 0)),
        ),
        compiler_params=pltpu.CompilerParams(
            dimension_semantics=("parallel", "arbitrary")),
    )(a2, b2)

    # Tiny final reduction (at most 2*8*128 f32) done in plain JAX.
    return jnp.sum(partial)


def _l1_mean(a, b, n_split, block_rows_max):
    """mean(|a - b|): Pallas for anything non-trivial, plain jnp for small."""
    assert a.shape == b.shape
    n = a.size
    if n < _MIN_PALLAS_ELEMS:
        return jnp.mean(jnp.abs(a.astype(jnp.float32) - b.astype(jnp.float32)))

    # Align to the coarser of the two dtypes' native (sublanes, 128) tile so
    # the BlockSpecs lower cleanly for f32 *and* bf16/int8 inputs.
    sub = max(_sublane_packing(a.dtype), _sublane_packing(b.dtype))
    tile = sub * _LANE
    n_aligned = (n // tile) * tile

    a_flat = a.reshape(-1)
    b_flat = b.reshape(-1)
    if n_aligned == n:
        total = _abs_diff_sum_pallas(a_flat.reshape(-1, _LANE),
                                     b_flat.reshape(-1, _LANE),
                                     n_split, block_rows_max)
    else:
        # No full-array jnp.pad copy: the aligned prefix streams through
        # Pallas, the (< sub*128-element) tail is summed in plain JAX.
        total = _abs_diff_sum_pallas(a_flat[:n_aligned].reshape(-1, _LANE),
                                     b_flat[:n_aligned].reshape(-1, _LANE),
                                     n_split, block_rows_max)
        total = total + jnp.sum(
            jnp.abs(a_flat[n_aligned:].astype(jnp.float32)
                    - b_flat[n_aligned:].astype(jnp.float32)))
    return total / jnp.float32(n)


def _nearest_resize_nchw(x, out_hw):
    """F.interpolate(x, size=out_hw) with the module's default mode='nearest'
    (legacy: src = floor(dst * in/out)) for NCHW input.  XLA glue.
    TODO(synk): if the reference module moves to 'nearest-exact' the index
    tables shift by up to one pixel."""
    H, W = x.shape[-2], x.shape[-1]
    out_h, out_w = out_hw
    if (out_h, out_w) == (H, W):
        return x
    if out_h != H:
        rows = np.minimum(np.floor(np.arange(out_h) * (H / out_h)),
                          H - 1).astype(np.int32)
        x = x[..., rows, :]
    if out_w != W:
        cols = np.minimum(np.floor(np.arange(out_w) * (W / out_w)),
                          W - 1).astype(np.int32)
        x = x[..., :, cols]
    return x


def pyr_loss(model_outputs, l_gausian):
    """JAX/Pallas port of PyrLoss.forward (nn.L1Loss has no parameters)."""
    n_split, block_rows_max = _chip_params()
    lap_level_count = len(model_outputs)
    total = jnp.float32(0.0)
    for l in range(2, lap_level_count + 1):
        model_output = model_outputs[-l]
        label = _nearest_resize_nchw(l_gausian[-l], model_output.shape[-2:])
        total = total + (2.0 ** (l - 2)) * _l1_mean(
            model_output, label, n_split, block_rows_max)
    return total


if __name__ == "__main__":
    key = jax.random.PRNGKey(0)
    B, C = 2, 3
    # model outputs (fine -> coarse UNet outputs), values in [0, 1]
    sizes = [(128, 128), (96, 96), (64, 64)]
    # gaussian pyramid of the label; slightly different spatial sizes so the
    # nearest-neighbor interpolate path is actually exercised
    gsizes = [(128, 128), (97, 97), (65, 65)]

    keys = jax.random.split(key, 2 * len(sizes) + 6)
    model_outputs = [
        jax.random.uniform(keys[i], (B, C, h, w), jnp.float32)
        for i, (h, w) in enumerate(sizes)
    ]
    l_gausian = [
        jax.random.uniform(keys[len(sizes) + i], (B, C, h, w), jnp.float32)
        for i, (h, w) in enumerate(gsizes)
    ]

    out = pyr_loss(model_outputs, l_gausian)
    jax.block_until_ready(out)

    # pure-JAX reference for correctness
    ref = jnp.float32(0.0)
    for l in range(2, len(model_outputs) + 1):
        mo = model_outputs[-l]
        lab = _nearest_resize_nchw(l_gausian[-l], mo.shape[-2:])
        ref = ref + (2.0 ** (l - 2)) * jnp.mean(jnp.abs(mo - lab))
    assert jnp.allclose(out, ref, rtol=2e-5, atol=1e-6), (out, ref)

    # Targeted kernel corner-case self-tests with forced tiny blocks so the
    # partial-block mask branch, the clamped duplicate block (odd num_blocks
    # with a 2-way split), the misaligned-tail path and bf16 sublane packing
    # are all exercised regardless of which TPU generation this runs on.
    def _check(name, a, b, n_split, bm, rtol):
        got = _l1_mean(a, b, n_split, bm)
        exp = jnp.mean(jnp.abs(a.astype(jnp.float32) - b.astype(jnp.float32)))
        assert jnp.allclose(got, exp, rtol=rtol, atol=1e-6), (name, got, exp)

    k = keys[2 * len(sizes):]
    a = jax.random.uniform(k[0], (2, 3, 100, 100), jnp.float32)
    b = jax.random.uniform(k[1], (2, 3, 100, 100), jnp.float32)
    _check("partial_block_and_tail", a, b, 2, 128, 1e-5)

    a = jax.random.uniform(k[2], (1, 3, 128, 128), jnp.float32)
    b = jax.random.uniform(k[3], (1, 3, 128, 128), jnp.float32)
    _check("odd_blocks_clamped_dup", a, b, 2, 128, 1e-5)

    a = jax.random.uniform(k[4], (2, 3, 96, 96), jnp.float32).astype(jnp.bfloat16)
    b = jax.random.uniform(k[5], (2, 3, 96, 96), jnp.float32).astype(jnp.bfloat16)
    _check("bf16_sublane_packing", a, b, 2, 128, 1e-4)

    print("KERNEL_OK")
</pallas_src>

<mosaic_0001>
module attributes {stable_mosaic.version = 11 : i64} {
  func.func @kernel(%arg0: i32, %arg1: i32, %arg2: memref<432x128xf32, #tpu.memory_space<vmem>>, %arg3: memref<432x128xf32, #tpu.memory_space<vmem>>, %arg4: memref<1x8x128xf32, #tpu.memory_space<vmem>>) attributes {dimension_semantics = [#tpu.dimension_semantics<parallel>, #tpu.dimension_semantics<arbitrary>], iteration_bounds = array<i64: 1, 1>, scalar_prefetch = 0 : i64, scratch_operands = 0 : i64, tpu.core_type = #tpu.core_type<tc>, window_params = [{transform_indices = @transform_0, window_bounds = array<i64: 432, 128>}, {transform_indices = @transform_1, window_bounds = array<i64: 432, 128>}, {transform_indices = @transform_2, window_bounds = array<i64: 1, 8, 128>}]} {
    %c0_i32 = arith.constant 0 : i32
    %0 = arith.cmpi eq, %arg1, %c0_i32 : i32
    %1 = arith.extui %0 : i1 to i32
    %c0_i32_0 = arith.constant 0 : i32
    %2 = arith.cmpi ne, %1, %c0_i32_0 : i32
    scf.if %2 {
      %cst = arith.constant 0.000000e+00 : f32
      %17 = vector.broadcast %cst : f32 to vector<1x8x128xf32>
      %c0_8 = arith.constant 0 : index
      %c0_9 = arith.constant 0 : index
      %c0_10 = arith.constant 0 : index
      %18 = vector.load %arg4[%c0_8, %c0_9, %c0_10] : memref<1x8x128xf32, #tpu.memory_space<vmem>>, vector<1x8x128xf32>
      tpu.vector_store %arg4[%c0_8, %c0_9, %c0_10], %17 {strides = array<i32>} : memref<1x8x128xf32, #tpu.memory_space<vmem>>, vector<1x8x128xf32>,
    } else {
    }
    %c0 = arith.constant 0 : index
    %c0_1 = arith.constant 0 : index
    %3 = vector.load %arg2[%c0, %c0_1] : memref<432x128xf32, #tpu.memory_space<vmem>>, vector<432x128xf32>
    %c0_2 = arith.constant 0 : index
    %c0_3 = arith.constant 0 : index
    %4 = vector.load %arg3[%c0_2, %c0_3] : memref<432x128xf32, #tpu.memory_space<vmem>>, vector<432x128xf32>
    %5 = arith.subf %3, %4 : vector<432x128xf32>
    %6 = math.absf %5 : vector<432x128xf32>
    %c1_i32 = arith.constant 1 : i32
    %7 = arith.muli %arg0, %c1_i32 : i32
    %8 = arith.addi %7, %arg1 : i32
    %c1_i32_4 = arith.constant 1 : i32
    %9 = arith.addi %8, %c1_i32_4 : i32
    %c432_i32 = arith.constant 432 : i32
    %10 = arith.muli %9, %c432_i32 : i32
    %c432_i32_5 = arith.constant 432 : i32
    %11 = arith.cmpi sle, %10, %c432_i32_5 : i32
    %12 = arith.extui %11 : i1 to i32
    %c0_i32_6 = arith.constant 0 : i32
    %13 = arith.cmpi ne, %12, %c0_i32_6 : i32
    scf.if %13 {
      %c0_8 = arith.constant 0 : index
      %c0_9 = arith.constant 0 : index
      %c0_10 = arith.constant 0 : index
      %17 = vector.load %arg4[%c0_8, %c0_9, %c0_10] : memref<1x8x128xf32, #tpu.memory_space<vmem>>, vector<1x8x128xf32>
      %18 = vector.shape_cast %6 : vector<432x128xf32> to vector<54x8x128xf32>
      %cst = arith.constant dense<0.000000e+00> : vector<8x128xf32>
      %19 = vector.multi_reduction <add>, %18, %cst [0] : vector<54x8x128xf32> to vector<8x128xf32>
      %20 = vector.shape_cast %19 : vector<8x128xf32> to vector<1x8x128xf32>
      %21 = arith.addf %17, %20 : vector<1x8x128xf32>
      %c0_11 = arith.constant 0 : index
      %c0_12 = arith.constant 0 : index
      %c0_13 = arith.constant 0 : index
      %22 = vector.load %arg4[%c0_11, %c0_12, %c0_13] : memref<1x8x128xf32, #tpu.memory_space<vmem>>, vector<1x8x128xf32>
      tpu.vector_store %arg4[%c0_11, %c0_12, %c0_13], %21 {strides = array<i32>} : memref<1x8x128xf32, #tpu.memory_space<vmem>>, vector<1x8x128xf32>,
    } else {
    }
    %true = arith.constant true
    %14 = arith.xori %11, %true : i1
    %15 = arith.extui %14 : i1 to i32
    %c0_i32_7 = arith.constant 0 : i32
    %16 = arith.cmpi ne, %15, %c0_i32_7 : i32
    scf.if %16 {
      %17 = tpu.iota {dimensions = array<i32: 0>} : vector<432x128xi32>
      %c432_i32_8 = arith.constant 432 : i32
      %18 = arith.muli %8, %c432_i32_8 : i32
      %19 = vector.broadcast %18 : i32 to vector<432x128xi32>
      %20 = arith.addi %19, %17 : vector<432x128xi32>
      %c432_i32_9 = arith.constant 432 : i32
      %21 = vector.broadcast %c432_i32_9 : i32 to vector<432x128xi32>
      %22 = arith.cmpi slt, %20, %21 : vector<432x128xi32>
      %cst = arith.constant 0.000000e+00 : f32
      %23 = vector.broadcast %cst : f32 to vector<432x128xf32>
      %24 = arith.select %22, %6, %23 : vector<432x128xi1>, vector<432x128xf32>
      %c0_10 = arith.constant 0 : index
      %c0_11 = arith.constant 0 : index
      %c0_12 = arith.constant 0 : index
      %25 = vector.load %arg4[%c0_10, %c0_11, %c0_12] : memref<1x8x128xf32, #tpu.memory_space<vmem>>, vector<1x8x128xf32>
      %26 = vector.shape_cast %24 : vector<432x128xf32> to vector<54x8x128xf32>
      %cst_13 = arith.constant dense<0.000000e+00> : vector<8x128xf32>
      %27 = vector.multi_reduction <add>, %26, %cst_13 [0] : vector<54x8x128xf32> to vector<8x128xf32>
      %28 = vector.shape_cast %27 : vector<8x128xf32> to vector<1x8x128xf32>
      %29 = arith.addf %25, %28 : vector<1x8x128xf32>
      %c0_14 = arith.constant 0 : index
      %c0_15 = arith.constant 0 : index
      %c0_16 = arith.constant 0 : index
      %30 = vector.load %arg4[%c0_14, %c0_15, %c0_16] : memref<1x8x128xf32, #tpu.memory_space<vmem>>, vector<1x8x128xf32>
      tpu.vector_store %arg4[%c0_14, %c0_15, %c0_16], %29 {strides = array<i32>} : memref<1x8x128xf32, #tpu.memory_space<vmem>>, vector<1x8x128xf32>,
    } else {
    }
    return
  }
  func.func @transform_0(%arg0: i32, %arg1: i32) -> (i32, i32) {
    %c1_i32 = arith.constant 1 : i32
    %0 = arith.muli %arg0, %c1_i32 : i32
    %1 = arith.addi %0, %arg1 : i32
    %c0_i32 = arith.constant 0 : i32
    %2 = arith.minsi %1, %c0_i32 : i32
    %c0_i32_0 = arith.constant 0 : i32
    %c0_i32_1 = arith.constant 0 : i32
    return %2, %c0_i32_0 : i32, i32
  }
  func.func @transform_1(%arg0: i32, %arg1: i32) -> (i32, i32) {
    %c1_i32 = arith.constant 1 : i32
    %0 = arith.muli %arg0, %c1_i32 : i32
    %1 = arith.addi %0, %arg1 : i32
    %c0_i32 = arith.constant 0 : i32
    %2 = arith.minsi %1, %c0_i32 : i32
    %c0_i32_0 = arith.constant 0 : i32
    %c0_i32_1 = arith.constant 0 : i32
    return %2, %c0_i32_0 : i32, i32
  }
  func.func @transform_2(%arg0: i32, %arg1: i32) -> (i32, i32, i32) {
    %c0_i32 = arith.constant 0 : i32
    %c0_i32_0 = arith.constant 0 : i32
    %c0_i32_1 = arith.constant 0 : i32
    return %arg0, %c0_i32, %c0_i32_0 : i32, i32, i32
  }
}

</mosaic_0001>

<llo_original>
// kernel: tpu_custom_call.1
$region0: #{tpu_custom_call.1}
  #allocation0 [shape = 'u32[]', space=smem, size = 0x4, offset = 0x4, fixed_abs, tag = 'smem constant byte address 0x4 - core index']
  #allocation1 [shape = 'u32[72,128]{1,0:T(1,128)}', space=vmem, size = 0x9000, scoped, tag = 'internal scratch']
  %s0 = inlined_call_operand.hbm [shape: f32[432,128], index: 0, kind: input, shape index: {}]
  %s1 = inlined_call_operand.hbm [shape: f32[432,128], index: 1, kind: input, shape index: {}]
  %s2 = inlined_call_operand.hbm [shape: f32[1,8,128], index: 2, kind: output, shape index: {}]
  %s3 = sld [smem:[#allocation0]]
  $region38: #{tpu_custom_call.1} parent=0
    _
  %s5 = ssub.s32 1, %s3
  %s6 = scalar_select 0, %s5, %s3
  $region1: #{tpu_custom_call.1} parent=0
    #allocation2 [shape = 'u8[221184]{0}', space=vmem, size = 0x36000, scoped, tag = 'input window, operand 0, single buffered']
    #allocation3 [shape = 's32[1]{0}', space=sflag, size = 0x4, scoped, tag = 'scoped memory for tpu_custom_call.1']
    #allocation4 [shape = 's32[1]{0}', space=sflag, size = 0x4, scoped, tag = 'scoped memory for tpu_custom_call.1']
    #allocation5 [shape = 'u8[221184]{0}', space=vmem, size = 0x36000, scoped, tag = 'input window, operand 1, single buffered']
    #allocation6 [shape = 's32[1]{0}', space=sflag, size = 0x4, scoped, tag = 'scoped memory for tpu_custom_call.1']
    #allocation7 [shape = 'u8[4096]{0}', space=vmem, size = 0x1000, scoped, tag = 'output window, operand 0, single buffered']
    %7 = vsyncpa [#allocation3], 0
    %8 = vsyncpa [#allocation6], 0
    %9 = vsyncpa [#allocation4], 0
    // Predicated region
    $region2: #{tpu_custom_call.1} parent=1 // pred_check
      _
    $region3: #{tpu_custom_call.1} parent=1 // pred_check_branch
      %11 = sbr.rel (0) target = $region5
    $region4: #{tpu_custom_call.1} parent=1 // pred_region
      %s12 = sadd.s32 0, 0
      %p13 = scmp.lt.s32.totalorder %s12, 0
      %s14 = scalar_select %p13, %s12, 0
      %s15 = smul.u32 54, %s14
      %17 = vsyncadd [#allocation3], 0
      %s18 = smul.addr %s15, 8
      %s19 = scalar_lea.hbm %s0, %s18
      %s20 = sshll.u32 %s19, 4
      %s21 = int_to_ptr.hbm [resolvable:$true] %s20
      %s22 = sshll.u32 [#allocation2], 4
      %s23 = int_to_ptr.vmem [resolvable:$true] %s22
      %28 = dma.hbm_to_vmem [thread:$0]  %s21, 6912, %s23, [#allocation3], 128, 128, 8
    $region5: #{tpu_custom_call.1} parent=1 // pred_fallthru
      _
    // Predicated region
    $region6: #{tpu_custom_call.1} parent=1 // pred_check
      _
    $region7: #{tpu_custom_call.1} parent=1 // pred_check_branch
      %30 = sbr.rel (0) target = $region9
    $region8: #{tpu_custom_call.1} parent=1 // pred_region
      %s31 = sadd.s32 0, 0
      %p32 = scmp.lt.s32.totalorder %s31, 0
      %s33 = scalar_select %p32, %s31, 0
      %s34 = smul.u32 54, %s33
      %36 = vsyncadd [#allocation6], 0
      %s37 = smul.addr %s34, 8
      %s38 = scalar_lea.hbm %s1, %s37
      %s39 = sshll.u32 %s38, 4
      %s40 = int_to_ptr.hbm [resolvable:$true] %s39
      %s41 = sshll.u32 [#allocation5], 4
      %s42 = int_to_ptr.vmem [resolvable:$true] %s41
      %47 = dma.hbm_to_vmem [thread:$0]  %s40, 6912, %s42, [#allocation6], 128, 128, 8
    $region9: #{tpu_custom_call.1} parent=1 // pred_fallthru
      _
    // Predicated region
    $region10: #{tpu_custom_call.1} parent=1 // pred_check
      _
    $region11: #{tpu_custom_call.1} parent=1 // pred_check_branch
      %49 = sbr.rel (0) target = $region13
    $region12: #{tpu_custom_call.1} parent=1 // pred_region
      %51 = dma.done [#allocation3], 6912
    $region13: #{tpu_custom_call.1} parent=1 // pred_fallthru
      _
    // Predicated region
    $region14: #{tpu_custom_call.1} parent=1 // pred_check
      _
    $region15: #{tpu_custom_call.1} parent=1 // pred_check_branch
      %53 = sbr.rel (0) target = $region17
    $region16: #{tpu_custom_call.1} parent=1 // pred_region
      %55 = dma.done [#allocation6], 6912
    $region17: #{tpu_custom_call.1} parent=1 // pred_fallthru
      _
    %s56 = sadd.s32 0, 0
    %p57 = scmp.lt.s32.totalorder %s56, 0
    %s58 = scalar_select %p57, %s56, 0
    %s59 = smul.u32 54, %s58
    %s60 = sadd.s32 0, 0
    %p61 = scmp.lt.s32.totalorder %s60, 0
    %s62 = scalar_select %p61, %s60, 0
    %s63 = smul.u32 54, %s62
    %p64 = scmp.eq.s32.totalorder 0, 0
    // Predicated region
    $region18: #{tpu_custom_call.1} parent=1 // pred_check
      %p65 = pneg %p64
    $region19: #{tpu_custom_call.1} parent=1 // pred_check_branch
      %67 = sbr.rel (%p65) target = $region21
    $region20: #{tpu_custom_call.1} parent=1 // pred_region
      %68 = vst [vmem:[#allocation7] sm:$0xff] 0.0
    $region21: #{tpu_custom_call.1} parent=1 // pred_fallthru
      _
    %v69 = vld [vmem:[#allocation2] sm:$0xff]
    %v70 = vld [vmem:[#allocation2 + $0x8] sm:$0xff]
    %v71 = vld [vmem:[#allocation2 + $0x10] sm:$0xff]
    %v72 = vld [vmem:[#allocation2 + $0x18] sm:$0xff]
    %v73 = vld [vmem:[#allocation2 + $0x20] sm:$0xff]
    %v74 = vld [vmem:[#allocation2 + $0x28] sm:$0xff]
    %v75 = vld [vmem:[#allocation2 + $0x30] sm:$0xff]
    %v76 = vld [vmem:[#allocation2 + $0x38] sm:$0xff]
    %v77 = vld [vmem:[#allocation2 + $0x40] sm:$0xff]
    %v78 = vld [vmem:[#allocation2 + $0x48] sm:$0xff]
    %v79 = vld [vmem:[#allocation2 + $0x50] sm:$0xff]
    %v80 = vld [vmem:[#allocation2 + $0x58] sm:$0xff]
    %v81 = vld [vmem:[#allocation2 + $0x60] sm:$0xff]
    %v82 = vld [vmem:[#allocation2 + $0x68] sm:$0xff]
    %v83 = vld [vmem:[#allocation2 + $0x70] sm:$0xff]
    %v84 = vld [vmem:[#allocation2 + $0x78] sm:$0xff]
    %v85 = vld [vmem:[#allocation2 + $0x80] sm:$0xff]
    %v86 = vld [vmem:[#allocation2 + $0x88] sm:$0xff]
    %v87 = vld [vmem:[#allocation2 + $0x90] sm:$0xff]
    %v88 = vld [vmem:[#allocation2 + $0x98] sm:$0xff]
    %v89 = vld [vmem:[#allocation2 + $0xa0] sm:$0xff]
    %v90 = vld [vmem:[#allocation2 + $0xa8] sm:$0xff]
    %v91 = vld [vmem:[#allocation2 + $0xb0] sm:$0xff]
    %v92 = vld [vmem:[#allocation2 + $0xb8] sm:$0xff]
    %v93 = vld [vmem:[#allocation2 + $0xc0] sm:$0xff]
    %v94 = vld [vmem:[#allocation2 + $0xc8] sm:$0xff]
    %v95 = vld [vmem:[#allocation2 + $0xd0] sm:$0xff]
    %v96 = vld [vmem:[#allocation2 + $0xd8] sm:$0xff]
    %v97 = vld [vmem:[#allocation2 + $0xe0] sm:$0xff]
    %v98 = vld [vmem:[#allocation2 + $0xe8] sm:$0xff]
    %v99 = vld [vmem:[#allocation2 + $0xf0] sm:$0xff]
    %v100 = vld [vmem:[#allocation2 + $0xf8] sm:$0xff]
    %v101 = vld [vmem:[#allocation2 + $0x100] sm:$0xff]
    %v102 = vld [vmem:[#allocation2 + $0x108] sm:$0xff]
    %v103 = vld [vmem:[#allocation2 + $0x110] sm:$0xff]
    %v104 = vld [vmem:[#allocation2 + $0x118] sm:$0xff]
    %v105 = vld [vmem:[#allocation2 + $0x120] sm:$0xff]
    %v106 = vld [vmem:[#allocation2 + $0x128] sm:$0xff]
    %v107 = vld [vmem:[#allocation2 + $0x130] sm:$0xff]
    %v108 = vld [vmem:[#allocation2 + $0x138] sm:$0xff]
    %v109 = vld [vmem:[#allocation2 + $0x140] sm:$0xff]
    %v110 = vld [vmem:[#allocation2 + $0x148] sm:$0xff]
    %v111 = vld [vmem:[#allocation2 + $0x150] sm:$0xff]
    %v112 = vld [vmem:[#allocation2 + $0x158] sm:$0xff]
    %v113 = vld [vmem:[#allocation2 + $0x160] sm:$0xff]
    %v114 = vld [vmem:[#allocation2 + $0x168] sm:$0xff]
    %v115 = vld [vmem:[#allocation2 + $0x170] sm:$0xff]
    %v116 = vld [vmem:[#allocation2 + $0x178] sm:$0xff]
    %v117 = vld [vmem:[#allocation2 + $0x180] sm:$0xff]
    %v118 = vld [vmem:[#allocation2 + $0x188] sm:$0xff]
    %v119 = vld [vmem:[#allocation2 + $0x190] sm:$0xff]
    %v120 = vld [vmem:[#allocation2 + $0x198] sm:$0xff]
    %v121 = vld [vmem:[#allocation2 + $0x1a0] sm:$0xff]
    %v122 = vld [vmem:[#allocation2 + $0x1a8] sm:$0xff]
    %v123 = vld [vmem:[#allocation5] sm:$0xff]
    %v124 = vld [vmem:[#allocation5 + $0x8] sm:$0xff]
    %v125 = vld [vmem:[#allocation5 + $0x10] sm:$0xff]
    %v126 = vld [vmem:[#allocation5 + $0x18] sm:$0xff]
    %v127 = vld [vmem:[#allocation5 + $0x20] sm:$0xff]
    %v128 = vld [vmem:[#allocation5 + $0x28] sm:$0xff]
    %v129 = vld [vmem:[#allocation5 + $0x30] sm:$0xff]
    %v130 = vld [vmem:[#allocation5 + $0x38] sm:$0xff]
    %v131 = vld [vmem:[#allocation5 + $0x40] sm:$0xff]
    %v132 = vld [vmem:[#allocation5 + $0x48] sm:$0xff]
    %v133 = vld [vmem:[#allocation5 + $0x50] sm:$0xff]
    %v134 = vld [vmem:[#allocation5 + $0x58] sm:$0xff]
    %v135 = vld [vmem:[#allocation5 + $0x60] sm:$0xff]
    %v136 = vld [vmem:[#allocation5 + $0x68] sm:$0xff]
    %v137 = vld [vmem:[#allocation5 + $0x70] sm:$0xff]
    %v138 = vld [vmem:[#allocation5 + $0x78] sm:$0xff]
    %v139 = vld [vmem:[#allocation5 + $0x80] sm:$0xff]
    %v140 = vld [vmem:[#allocation5 + $0x88] sm:$0xff]
    %v141 = vld [vmem:[#allocation5 + $0x90] sm:$0xff]
    %v142 = vld [vmem:[#allocation5 + $0x98] sm:$0xff]
    %v143 = vld [vmem:[#allocation5 + $0xa0] sm:$0xff]
    %v144 = vld [vmem:[#allocation5 + $0xa8] sm:$0xff]
    %v145 = vld [vmem:[#allocation5 + $0xb0] sm:$0xff]
    %v146 = vld [vmem:[#allocation5 + $0xb8] sm:$0xff]
    %v147 = vld [vmem:[#allocation5 + $0xc0] sm:$0xff]
    %v148 = vld [vmem:[#allocation5 + $0xc8] sm:$0xff]
    %v149 = vld [vmem:[#allocation5 + $0xd0] sm:$0xff]
    %v150 = vld [vmem:[#allocation5 + $0xd8] sm:$0xff]
    %v151 = vld [vmem:[#allocation5 + $0xe0] sm:$0xff]
    %v152 = vld [vmem:[#allocation5 + $0xe8] sm:$0xff]
    %v153 = vld [vmem:[#allocation5 + $0xf0] sm:$0xff]
    %v154 = vld [vmem:[#allocation5 + $0xf8] sm:$0xff]
    %v155 = vld [vmem:[#allocation5 + $0x100] sm:$0xff]
    %v156 = vld [vmem:[#allocation5 + $0x108] sm:$0xff]
    %v157 = vld [vmem:[#allocation5 + $0x110] sm:$0xff]
    %v158 = vld [vmem:[#allocation5 + $0x118] sm:$0xff]
    %v159 = vld [vmem:[#allocation5 + $0x120] sm:$0xff]
    %v160 = vld [vmem:[#allocation5 + $0x128] sm:$0xff]
    %v161 = vld [vmem:[#allocation5 + $0x130] sm:$0xff]
    %v162 = vld [vmem:[#allocation5 + $0x138] sm:$0xff]
    %v163 = vld [vmem:[#allocation5 + $0x140] sm:$0xff]
    %v164 = vld [vmem:[#allocation5 + $0x148] sm:$0xff]
    %v165 = vld [vmem:[#allocation5 + $0x150] sm:$0xff]
    %v166 = vld [vmem:[#allocation5 + $0x158] sm:$0xff]
    %v167 = vld [vmem:[#allocation5 + $0x160] sm:$0xff]
    %v168 = vld [vmem:[#allocation5 + $0x168] sm:$0xff]
    %v169 = vld [vmem:[#allocation5 + $0x170] sm:$0xff]
    %v170 = vld [vmem:[#allocation5 + $0x178] sm:$0xff]
    %v171 = vld [vmem:[#allocation5 + $0x180] sm:$0xff]
    %v172 = vld [vmem:[#allocation5 + $0x188] sm:$0xff]
    %v173 = vld [vmem:[#allocation5 + $0x190] sm:$0xff]
    %v174 = vld [vmem:[#allocation5 + $0x198] sm:$0xff]
    %v175 = vld [vmem:[#allocation5 + $0x1a0] sm:$0xff]
    %v176 = vld [vmem:[#allocation5 + $0x1a8] sm:$0xff]
    %v177 = vsub.f32 %v69, %v123
    %v178 = vsub.f32 %v70, %v124
    %v179 = vsub.f32 %v71, %v125
    %v180 = vsub.f32 %v72, %v126
    %v181 = vsub.f32 %v73, %v127
    %v182 = vsub.f32 %v74, %v128
    %v183 = vsub.f32 %v75, %v129
    %v184 = vsub.f32 %v76, %v130
    %v185 = vsub.f32 %v77, %v131
    %v186 = vsub.f32 %v78, %v132
    %v187 = vsub.f32 %v79, %v133
    %v188 = vsub.f32 %v80, %v134
    %v189 = vsub.f32 %v81, %v135
    %v190 = vsub.f32 %v82, %v136
    %v191 = vsub.f32 %v83, %v137
    %v192 = vsub.f32 %v84, %v138
    %v193 = vsub.f32 %v85, %v139
    %v194 = vsub.f32 %v86, %v140
    %v195 = vsub.f32 %v87, %v141
    %v196 = vsub.f32 %v88, %v142
    %v197 = vsub.f32 %v89, %v143
    %v198 = vsub.f32 %v90, %v144
    %v199 = vsub.f32 %v91, %v145
    %v200 = vsub.f32 %v92, %v146
    %v201 = vsub.f32 %v93, %v147
    %v202 = vsub.f32 %v94, %v148
    %v203 = vsub.f32 %v95, %v149
    %v204 = vsub.f32 %v96, %v150
    %v205 = vsub.f32 %v97, %v151
    %v206 = vsub.f32 %v98, %v152
    %v207 = vsub.f32 %v99, %v153
    %v208 = vsub.f32 %v100, %v154
    %v209 = vsub.f32 %v101, %v155
    %v210 = vsub.f32 %v102, %v156
    %v211 = vsub.f32 %v103, %v157
    %v212 = vsub.f32 %v104, %v158
    %v213 = vsub.f32 %v105, %v159
    %v214 = vsub.f32 %v106, %v160
    %v215 = vsub.f32 %v107, %v161
    %v216 = vsub.f32 %v108, %v162
    %v217 = vsub.f32 %v109, %v163
    %v218 = vsub.f32 %v110, %v164
    %v219 = vsub.f32 %v111, %v165
    %v220 = vsub.f32 %v112, %v166
    %v221 = vsub.f32 %v113, %v167
    %v222 = vsub.f32 %v114, %v168
    %v223 = vsub.f32 %v115, %v169
    %v224 = vsub.f32 %v116, %v170
    %v225 = vsub.f32 %v117, %v171
    %v226 = vsub.f32 %v118, %v172
    %v227 = vsub.f32 %v119, %v173
    %v228 = vsub.f32 %v120, %v174
    %v229 = vsub.f32 %v121, %v175
    %v230 = vsub.f32 %v122, %v176
    %v231 = vand.u32 2147483647, %v177
    %v232 = vand.u32 2147483647, %v178
    %v233 = vand.u32 2147483647, %v179
    %v234 = vand.u32 2147483647, %v180
    %v235 = vand.u32 2147483647, %v181
    %v236 = vand.u32 2147483647, %v182
    %v237 = vand.u32 2147483647, %v183
    %v238 = vand.u32 2147483647, %v184
    %v239 = vand.u32 2147483647, %v185
    %v240 = vand.u32 2147483647, %v186
    %v241 = vand.u32 2147483647, %v187
    %v242 = vand.u32 2147483647, %v188
    %v243 = vand.u32 2147483647, %v189
    %v244 = vand.u32 2147483647, %v190
    %v245 = vand.u32 2147483647, %v191
    %v246 = vand.u32 2147483647, %v192
    %v247 = vand.u32 2147483647, %v193
    %v248 = vand.u32 2147483647, %v194
    %v249 = vand.u32 2147483647, %v195
    %v250 = vand.u32 2147483647, %v196
    %v251 = vand.u32 2147483647, %v197
    %v252 = vand.u32 2147483647, %v198
    %v253 = vand.u32 2147483647, %v199
    %v254 = vand.u32 2147483647, %v200
    %v255 = vand.u32 2147483647, %v201
    %v256 = vand.u32 2147483647, %v202
    %v257 = vand.u32 2147483647, %v203
    %v258 = vand.u32 2147483647, %v204
    %v259 = vand.u32 2147483647, %v205
    %v260 = vand.u32 2147483647, %v206
    %v261 = vand.u32 2147483647, %v207
    %v262 = vand.u32 2147483647, %v208
    %v263 = vand.u32 2147483647, %v209
    %v264 = vand.u32 2147483647, %v210
    %v265 = vand.u32 2147483647, %v211
    %v266 = vand.u32 2147483647, %v212
    %v267 = vand.u32 2147483647, %v213
    %v268 = vand.u32 2147483647, %v214
    %v269 = vand.u32 2147483647, %v215
    %v270 = vand.u32 2147483647, %v216
    %v271 = vand.u32 2147483647, %v217
    %v272 = vand.u32 2147483647, %v218
    %v273 = vand.u32 2147483647, %v219
    %v274 = vand.u32 2147483647, %v220
    %v275 = vand.u32 2147483647, %v221
    %v276 = vand.u32 2147483647, %v222
    %v277 = vand.u32 2147483647, %v223
    %v278 = vand.u32 2147483647, %v224
    %v279 = vand.u32 2147483647, %v225
    %v280 = vand.u32 2147483647, %v226
    %v281 = vand.u32 2147483647, %v227
    %v282 = vand.u32 2147483647, %v228
    %v283 = vand.u32 2147483647, %v229
    %v284 = vand.u32 2147483647, %v230
    %s285 = sadd.s32 0, 0
    %s286 = sadd.s32 %s285, 1
    %s287 = smul.u32 %s286, 432
    %p288 = scmp.le.s32.totalorder %s287, 432
    // Predicated region
    $region22: #{tpu_custom_call.1} parent=1 // pred_check
      %p289 = pneg %p288
    $region23: #{tpu_custom_call.1} parent=1 // pred_check_branch
      %291 = sbr.rel (%p289) target = $region25
    $region24: #{tpu_custom_call.1} parent=1 // pred_region
      %v292 = vld [vmem:[#allocation7] sm:$0xff]
      %v293 = vadd.f32 %v231, %v232
      %v294 = vadd.f32 %v293, %v233
      %v295 = vadd.f32 %v294, %v234
      %v296 = vadd.f32 %v295, %v235
      %v297 = vadd.f32 %v296, %v236
      %v298 = vadd.f32 %v297, %v237
      %v299 = vadd.f32 %v298, %v238
      %v300 = vadd.f32 %v299, %v239
      %v301 = vadd.f32 %v300, %v240
      %v302 = vadd.f32 %v301, %v241
      %v303 = vadd.f32 %v302, %v242
      %v304 = vadd.f32 %v303, %v243
      %v305 = vadd.f32 %v304, %v244
      %v306 = vadd.f32 %v305, %v245
      %v307 = vadd.f32 %v306, %v246
      %v308 = vadd.f32 %v307, %v247
      %v309 = vadd.f32 %v308, %v248
      %v310 = vadd.f32 %v309, %v249
      %v311 = vadd.f32 %v310, %v250
      %v312 = vadd.f32 %v311, %v251
      %v313 = vadd.f32 %v312, %v252
      %v314 = vadd.f32 %v313, %v253
      %v315 = vadd.f32 %v314, %v254
      %v316 = vadd.f32 %v315, %v255
      %v317 = vadd.f32 %v316, %v256
      %v318 = vadd.f32 %v317, %v257
      %v319 = vadd.f32 %v318, %v258
      %v320 = vadd.f32 %v319, %v259
      %v321 = vadd.f32 %v320, %v260
      %v322 = vadd.f32 %v321, %v261
      %v323 = vadd.f32 %v322, %v262
      %v324 = vadd.f32 %v323, %v263
      %v325 = vadd.f32 %v324, %v264
      %v326 = vadd.f32 %v325, %v265
      %v327 = vadd.f32 %v326, %v266
      %v328 = vadd.f32 %v327, %v267
      %v329 = vadd.f32 %v328, %v268
      %v330 = vadd.f32 %v329, %v269
      %v331 = vadd.f32 %v330, %v270
      %v332 = vadd.f32 %v331, %v271
      %v333 = vadd.f32 %v332, %v272
      %v334 = vadd.f32 %v333, %v273
      %v335 = vadd.f32 %v334, %v274
      %v336 = vadd.f32 %v335, %v275
      %v337 = vadd.f32 %v336, %v276
      %v338 = vadd.f32 %v337, %v277
      %v339 = vadd.f32 %v338, %v278
      %v340 = vadd.f32 %v339, %v279
      %v341 = vadd.f32 %v340, %v280
      %v342 = vadd.f32 %v341, %v281
      %v343 = vadd.f32 %v342, %v282
      %v344 = vadd.f32 %v343, %v283
      %v345 = vadd.f32 %v344, %v284
      %v346 = vadd.f32 %v292, %v345
      %347 = vst [vmem:[#allocation7] sm:$0xff] %v346
    $region25: #{tpu_custom_call.1} parent=1 // pred_fallthru
      _
    %p348 = scmp.gt.s32.totalorder %s287, 432
    // Predicated region
    $region26: #{tpu_custom_call.1} parent=1 // pred_check
      %p349 = pneg %p348
    $region27: #{tpu_custom_call.1} parent=1 // pred_check_branch
      %351 = sbr.rel (%p349) target = $region29
    $region28: #{tpu_custom_call.1} parent=1 // pred_region
      %v352 = vlaneseq
      %v353 = vshrl.u32 %v352, 7
      %v354 = vadd.s32 %v353, 8
      %v355 = vadd.s32 %v353, 16
      %v356 = vadd.s32 %v353, 24
      %v357 = vadd.s32 %v353, 32
      %v358 = vadd.s32 %v353, 40
      %v359 = vadd.s32 %v353, 48
      %v360 = vadd.s32 %v353, 56
      %v361 = vadd.s32 %v353, 64
      %v362 = vadd.s32 %v353, 72
      %v363 = vadd.s32 %v353, 80
      %v364 = vadd.s32 %v353, 88
      %v365 = vadd.s32 %v353, 96
      %v366 = vadd.s32 %v353, 104
      %v367 = vadd.s32 %v353, 112
      %v368 = vadd.s32 %v353, 120
      %v369 = vadd.s32 %v353, 128
      %v370 = vadd.s32 %v353, 136
      %v371 = vadd.s32 %v353, 144
      %v372 = vadd.s32 %v353, 152
      %v373 = vadd.s32 %v353, 160
      %v374 = vadd.s32 %v353, 168
      %v375 = vadd.s32 %v353, 176
      %v376 = vadd.s32 %v353, 184
      %v377 = vadd.s32 %v353, 192
      %v378 = vadd.s32 %v353, 200
      %v379 = vadd.s32 %v353, 208
      %v380 = vadd.s32 %v353, 216
      %v381 = vadd.s32 %v353, 224
      %v382 = vadd.s32 %v353, 232
      %v383 = vadd.s32 %v353, 240
      %v384 = vadd.s32 %v353, 248
      %v385 = vadd.s32 %v353, 256
      %v386 = vadd.s32 %v353, 264
      %v387 = vadd.s32 %v353, 272
      %v388 = vadd.s32 %v353, 280
      %v389 = vadd.s32 %v353, 288
      %v390 = vadd.s32 %v353, 296
      %v391 = vadd.s32 %v353, 304
      %v392 = vadd.s32 %v353, 312
      %v393 = vadd.s32 %v353, 320
      %v394 = vadd.s32 %v353, 328
      %v395 = vadd.s32 %v353, 336
      %v396 = vadd.s32 %v353, 344
      %v397 = vadd.s32 %v353, 352
      %v398 = vadd.s32 %v353, 360
      %v399 = vadd.s32 %v353, 368
      %v400 = vadd.s32 %v353, 376
      %v401 = vadd.s32 %v353, 384
      %v402 = vadd.s32 %v353, 392
      %v403 = vadd.s32 %v353, 400
      %v404 = vadd.s32 %v353, 408
      %v405 = vadd.s32 %v353, 416
      %v406 = vadd.s32 %v353, 424
      %s407 = smul.u32 %s285, 432
      %v408 = vstv %s407
      %v409 = vadd.s32 %v408, %v353
      %v410 = vadd.s32 %v408, %v354
      %v411 = vadd.s32 %v408, %v355
      %v412 = vadd.s32 %v408, %v356
      %v413 = vadd.s32 %v408, %v357
      %v414 = vadd.s32 %v408, %v358
      %v415 = vadd.s32 %v408, %v359
      %v416 = vadd.s32 %v408, %v360
      %v417 = vadd.s32 %v408, %v361
      %v418 = vadd.s32 %v408, %v362
      %v419 = vadd.s32 %v408, %v363
      %v420 = vadd.s32 %v408, %v364
      %v421 = vadd.s32 %v408, %v365
      %v422 = vadd.s32 %v408, %v366
      %v423 = vadd.s32 %v408, %v367
      %v424 = vadd.s32 %v408, %v368
      %v425 = vadd.s32 %v408, %v369
      %v426 = vadd.s32 %v408, %v370
      %v427 = vadd.s32 %v408, %v371
      %v428 = vadd.s32 %v408, %v372
      %v429 = vadd.s32 %v408, %v373
      %v430 = vadd.s32 %v408, %v374
      %v431 = vadd.s32 %v408, %v375
      %v432 = vadd.s32 %v408, %v376
      %v433 = vadd.s32 %v408, %v377
      %v434 = vadd.s32 %v408, %v378
      %v435 = vadd.s32 %v408, %v379
      %v436 = vadd.s32 %v408, %v380
      %v437 = vadd.s32 %v408, %v381
      %v438 = vadd.s32 %v408, %v382
      %v439 = vadd.s32 %v408, %v383
      %v440 = vadd.s32 %v408, %v384
      %v441 = vadd.s32 %v408, %v385
      %v442 = vadd.s32 %v408, %v386
      %v443 = vadd.s32 %v408, %v387
      %v444 = vadd.s32 %v408, %v388
      %v445 = vadd.s32 %v408, %v389
      %v446 = vadd.s32 %v408, %v390
      %v447 = vadd.s32 %v408, %v391
      %v448 = vadd.s32 %v408, %v392
      %v449 = vadd.s32 %v408, %v393
      %v450 = vadd.s32 %v408, %v394
      %v451 = vadd.s32 %v408, %v395
      %v452 = vadd.s32 %v408, %v396
      %v453 = vadd.s32 %v408, %v397
      %v454 = vadd.s32 %v408, %v398
      %v455 = vadd.s32 %v408, %v399
      %v456 = vadd.s32 %v408, %v400
      %v457 = vadd.s32 %v408, %v401
      %v458 = vadd.s32 %v408, %v402
      %v459 = vadd.s32 %v408, %v403
      %v460 = vadd.s32 %v408, %v404
      %v461 = vadd.s32 %v408, %v405
      %v462 = vadd.s32 %v408, %v406
      %vm463 = vcmp.lt.s32.totalorder %v409, 432
      %vm464 = vcmp.lt.s32.totalorder %v410, 432
      %vm465 = vcmp.lt.s32.totalorder %v411, 432
      %vm466 = vcmp.lt.s32.totalorder %v412, 432
      %vm467 = vcmp.lt.s32.totalorder %v413, 432
      %vm468 = vcmp.lt.s32.totalorder %v414, 432
      %vm469 = vcmp.lt.s32.totalorder %v415, 432
      %vm470 = vcmp.lt.s32.totalorder %v416, 432
      %vm471 = vcmp.lt.s32.totalorder %v417, 432
      %vm472 = vcmp.lt.s32.totalorder %v418, 432
      %vm473 = vcmp.lt.s32.totalorder %v419, 432
      %vm474 = vcmp.lt.s32.totalorder %v420, 432
      %vm475 = vcmp.lt.s32.totalorder %v421, 432
      %vm476 = vcmp.lt.s32.totalorder %v422, 432
      %vm477 = vcmp.lt.s32.totalorder %v423, 432
      %vm478 = vcmp.lt.s32.totalorder %v424, 432
      %vm479 = vcmp.lt.s32.totalorder %v425, 432
      %vm480 = vcmp.lt.s32.totalorder %v426, 432
      %vm481 = vcmp.lt.s32.totalorder %v427, 432
      %vm482 = vcmp.lt.s32.totalorder %v428, 432
      %vm483 = vcmp.lt.s32.totalorder %v429, 432
      %vm484 = vcmp.lt.s32.totalorder %v430, 432
      %vm485 = vcmp.lt.s32.totalorder %v431, 432
      %vm486 = vcmp.lt.s32.totalorder %v432, 432
      %vm487 = vcmp.lt.s32.totalorder %v433, 432
      %vm488 = vcmp.lt.s32.totalorder %v434, 432
      %vm489 = vcmp.lt.s32.totalorder %v435, 432
      %vm490 = vcmp.lt.s32.totalorder %v436, 432
      %vm491 = vcmp.lt.s32.totalorder %v437, 432
      %vm492 = vcmp.lt.s32.totalorder %v438, 432
      %vm493 = vcmp.lt.s32.totalorder %v439, 432
      %vm494 = vcmp.lt.s32.totalorder %v440, 432
      %vm495 = vcmp.lt.s32.totalorder %v441, 432
      %vm496 = vcmp.lt.s32.totalorder %v442, 432
      %vm497 = vcmp.lt.s32.totalorder %v443, 432
      %vm498 = vcmp.lt.s32.totalorder %v444, 432
      %vm499 = vcmp.lt.s32.totalorder %v445, 432
      %vm500 = vcmp.lt.s32.totalorder %v446, 432
      %vm501 = vcmp.lt.s32.totalorder %v447, 432
      %vm502 = vcmp.lt.s32.totalorder %v448, 432
      %vm503 = vcmp.lt.s32.totalorder %v449, 432
      %vm504 = vcmp.lt.s32.totalorder %v450, 432
      %vm505 = vcmp.lt.s32.totalorder %v451, 432
      %vm506 = vcmp.lt.s32.totalorder %v452, 432
      %vm507 = vcmp.lt.s32.totalorder %v453, 432
      %vm508 = vcmp.lt.s32.totalorder %v454, 432
      %vm509 = vcmp.lt.s32.totalorder %v455, 432
      %vm510 = vcmp.lt.s32.totalorder %v456, 432
      %vm511 = vcmp.lt.s32.totalorder %v457, 432
      %vm512 = vcmp.lt.s32.totalorder %v458, 432
      %vm513 = vcmp.lt.s32.totalorder %v459, 432
      %vm514 = vcmp.lt.s32.totalorder %v460, 432
      %vm515 = vcmp.lt.s32.totalorder %v461, 432
      %vm516 = vcmp.lt.s32.totalorder %v462, 432
      %v517 = vsel %vm463, %v231, 0.0
      %v518 = vsel %vm464, %v232, 0.0
      %v519 = vsel %vm465, %v233, 0.0
      %v520 = vsel %vm466, %v234, 0.0
      %v521 = vsel %vm467, %v235, 0.0
      %v522 = vsel %vm468, %v236, 0.0
      %v523 = vsel %vm469, %v237, 0.0
      %v524 = vsel %vm470, %v238, 0.0
      %v525 = vsel %vm471, %v239, 0.0
      %v526 = vsel %vm472, %v240, 0.0
      %v527 = vsel %vm473, %v241, 0.0
      %v528 = vsel %vm474, %v242, 0.0
      %v529 = vsel %vm475, %v243, 0.0
      %v530 = vsel %vm476, %v244, 0.0
      %v531 = vsel %vm477, %v245, 0.0
      %v532 = vsel %vm478, %v246, 0.0
      %v533 = vsel %vm479, %v247, 0.0
      %v534 = vsel %vm480, %v248, 0.0
      %v535 = vsel %vm481, %v249, 0.0
      %v536 = vsel %vm482, %v250, 0.0
      %v537 = vsel %vm483, %v251, 0.0
      %v538 = vsel %vm484, %v252, 0.0
      %v539 = vsel %vm485, %v253, 0.0
      %v540 = vsel %vm486, %v254, 0.0
      %v541 = vsel %vm487, %v255, 0.0
      %v542 = vsel %vm488, %v256, 0.0
      %v543 = vsel %vm489, %v257, 0.0
      %v544 = vsel %vm490, %v258, 0.0
      %v545 = vsel %vm491, %v259, 0.0
      %v546 = vsel %vm492, %v260, 0.0
      %v547 = vsel %vm493, %v261, 0.0
      %v548 = vsel %vm494, %v262, 0.0
      %v549 = vsel %vm495, %v263, 0.0
      %v550 = vsel %vm496, %v264, 0.0
      %v551 = vsel %vm497, %v265, 0.0
      %v552 = vsel %vm498, %v266, 0.0
      %v553 = vsel %vm499, %v267, 0.0
      %v554 = vsel %vm500, %v268, 0.0
      %v555 = vsel %vm501, %v269, 0.0
      %v556 = vsel %vm502, %v270, 0.0
      %v557 = vsel %vm503, %v271, 0.0
      %v558 = vsel %vm504, %v272, 0.0
      %v559 = vsel %vm505, %v273, 0.0
      %v560 = vsel %vm506, %v274, 0.0
      %v561 = vsel %vm507, %v275, 0.0
      %v562 = vsel %vm508, %v276, 0.0
      %v563 = vsel %vm509, %v277, 0.0
      %v564 = vsel %vm510, %v278, 0.0
      %v565 = vsel %vm511, %v279, 0.0
      %v566 = vsel %vm512, %v280, 0.0
      %v567 = vsel %vm513, %v281, 0.0
      %v568 = vsel %vm514, %v282, 0.0
      %v569 = vsel %vm515, %v283, 0.0
      %v570 = vsel %vm516, %v284, 0.0
      %v571 = vld [vmem:[#allocation7] sm:$0xff]
      %v572 = vadd.f32 %v517, %v518
      %v573 = vadd.f32 %v572, %v519
      %v574 = vadd.f32 %v573, %v520
      %v575 = vadd.f32 %v574, %v521
      %v576 = vadd.f32 %v575, %v522
      %v577 = vadd.f32 %v576, %v523
      %v578 = vadd.f32 %v577, %v524
      %v579 = vadd.f32 %v578, %v525
      %v580 = vadd.f32 %v579, %v526
      %v581 = vadd.f32 %v580, %v527
      %v582 = vadd.f32 %v581, %v528
      %v583 = vadd.f32 %v582, %v529
      %v584 = vadd.f32 %v583, %v530
      %v585 = vadd.f32 %v584, %v531
      %v586 = vadd.f32 %v585, %v532
      %v587 = vadd.f32 %v586, %v533
      %v588 = vadd.f32 %v587, %v534
      %v589 = vadd.f32 %v588, %v535
      %v590 = vadd.f32 %v589, %v536
      %v591 = vadd.f32 %v590, %v537
      %v592 = vadd.f32 %v591, %v538
      %v593 = vadd.f32 %v592, %v539
      %v594 = vadd.f32 %v593, %v540
      %v595 = vadd.f32 %v594, %v541
      %v596 = vadd.f32 %v595, %v542
      %v597 = vadd.f32 %v596, %v543
      %v598 = vadd.f32 %v597, %v544
      %v599 = vadd.f32 %v598, %v545
      %v600 = vadd.f32 %v599, %v546
      %v601 = vadd.f32 %v600, %v547
      %v602 = vadd.f32 %v601, %v548
      %v603 = vadd.f32 %v602, %v549
      %v604 = vadd.f32 %v603, %v550
      %v605 = vadd.f32 %v604, %v551
      %v606 = vadd.f32 %v605, %v552
      %v607 = vadd.f32 %v606, %v553
      %v608 = vadd.f32 %v607, %v554
      %v609 = vadd.f32 %v608, %v555
      %v610 = vadd.f32 %v609, %v556
      %v611 = vadd.f32 %v610, %v557
      %v612 = vadd.f32 %v611, %v558
      %v613 = vadd.f32 %v612, %v559
      %v614 = vadd.f32 %v613, %v560
      %v615 = vadd.f32 %v614, %v561
      %v616 = vadd.f32 %v615, %v562
      %v617 = vadd.f32 %v616, %v563
      %v618 = vadd.f32 %v617, %v564
      %v619 = vadd.f32 %v618, %v565
      %v620 = vadd.f32 %v619, %v566
      %v621 = vadd.f32 %v620, %v567
      %v622 = vadd.f32 %v621, %v568
      %v623 = vadd.f32 %v622, %v569
      %v624 = vadd.f32 %v623, %v570
      %v625 = vadd.f32 %v571, %v624
      %626 = vst [vmem:[#allocation7] sm:$0xff] %v625
    $region29: #{tpu_custom_call.1} parent=1 // pred_fallthru
      _
    // Predicated region
    $region30: #{tpu_custom_call.1} parent=1 // pred_check
      _
    $region31: #{tpu_custom_call.1} parent=1 // pred_check_branch
      %628 = sbr.rel (0) target = $region33
    $region32: #{tpu_custom_call.1} parent=1 // pred_region
      %630 = vsyncadd [#allocation4], 0
      %s632 = sshll.u32 [#allocation7], 4
      %s633 = int_to_ptr.vmem [resolvable:$true] %s632
      %s634 = sshll.u32 %s2, 4
      %s635 = int_to_ptr.hbm [resolvable:$true] %s634
      %637 = dma.vmem_to_hbm [thread:$0]  %s633, 128, %s635, [#allocation4]
    $region33: #{tpu_custom_call.1} parent=1 // pred_fallthru
      _
    // Predicated region
    $region34: #{tpu_custom_call.1} parent=1 // pred_check
      _
    $region35: #{tpu_custom_call.1} parent=1 // pred_check_branch
      %639 = sbr.rel (0) target = $region37
    $region36: #{tpu_custom_call.1} parent=1 // pred_region
      %641 = dma.done [#allocation4], 128
    $region37: #{tpu_custom_call.1} parent=1 // pred_fallthru
      _
    %642 = vsyncpa [#allocation3], 1
    %643 = vsyncpa [#allocation6], 1
    %644 = vsyncpa [#allocation4], 1

</llo_original>
